<compile_context>
chip_gen: v6e
topology: v6e:2x2x1
jax: 0.10.0
libtpu: 0.0.40
codegen_flags: <defaults>
</compile_context>

<pallas_src>
import functools

import jax
import jax.numpy as jnp
from jax.experimental import pallas as pl
from jax.experimental.pallas import tpu as pltpu


def _round_up(x: int, m: int) -> int:
    return (x + m - 1) // m * m


def _pad_vec(v, n):
    """[K] -> f32 [1, n], zero-padded only if needed."""
    v = v.astype(jnp.float32)
    if v.shape[0] != n:
        v = jnp.pad(v, (0, n - v.shape[0]))
    return v.reshape(1, n)


# ---------------------------------------------------------------------------
# Kernel 1: fused dense + BertLayerNorm  (BertPredictionHeadTransform)
# ---------------------------------------------------------------------------
def dense_layernorm_kernel(x_ref, w_ref, b_ref, g_ref, be_ref, o_ref,
                           *, h_true: float, eps: float):
    # Linear: bf16 MXU operands (activation cast in-kernel, no extra HBM pass),
    # f32 accumulation.
    x = jnp.dot(x_ref[...].astype(jnp.bfloat16), w_ref[...],
                preferred_element_type=jnp.float32)
    x = x + b_ref[...]
    # BertLayerNorm over the true H lanes.  Contract: any padded lanes are
    # exactly zero because weight columns / bias / gamma / beta are zero-padded
    # in the wrapper, so dividing full-lane sums by h_true is the exact mean.
    inv_h = 1.0 / h_true
    u = jnp.sum(x, axis=-1, keepdims=True) * inv_h
    ex2 = jnp.sum(x * x, axis=-1, keepdims=True) * inv_h
    var = jnp.maximum(ex2 - u * u, 0.0)           # single-pass var, f32, clamped
    xn = (x - u) * jax.lax.rsqrt(var + eps)       # rsqrt -> EUP slot
    o_ref[...] = (g_ref[...] * xn + be_ref[...]).astype(o_ref.dtype)


def dense_layernorm(x2d, w, b, gamma, beta, *, eps: float = 1e-12, tm: int = 512,
                    out_dtype=None, vmem_limit_bytes: int = 48 << 20):
    """LayerNorm(x2d @ w + b).  x2d: [N, H_in], w: [H_in, H_out] -> [N, H_out]."""
    N, H_in = x2d.shape
    assert w.shape[0] == H_in
    H_out = w.shape[1]
    out_dtype = x2d.dtype if out_dtype is None else out_dtype

    Hi_pad = _round_up(H_in, 128)
    Ho_pad = _round_up(H_out, 128)

    # Activations stay in native dtype; pads only when not 128-aligned.
    x_p = x2d if Hi_pad == H_in else jnp.pad(x2d, ((0, 0), (0, Hi_pad - H_in)))
    w_p = w.astype(jnp.bfloat16)
    if (Hi_pad, Ho_pad) != w.shape:
        w_p = jnp.pad(w_p, ((0, Hi_pad - H_in), (0, Ho_pad - H_out)))
    b_p = _pad_vec(b, Ho_pad)
    g_p = _pad_vec(gamma, Ho_pad)
    be_p = _pad_vec(beta, Ho_pad)

    # Row tile: cap at `tm`, but guarantee >= 2 tiles when possible (v7x has
    # 2 TensorCores per chip).
    TM = max(8, min(tm, _round_up(pl.cdiv(N, 2), 8)))
    grid = (pl.cdiv(N, TM),)

    kernel = functools.partial(dense_layernorm_kernel,
                               h_true=float(H_out), eps=float(eps))
    out = pl.pallas_call(
        kernel,
        out_shape=jax.ShapeDtypeStruct((N, Ho_pad), out_dtype),
        grid_spec=pltpu.PrefetchScalarGridSpec(
            num_scalar_prefetch=0,
            grid=grid,
            in_specs=[
                pl.BlockSpec((TM, Hi_pad), lambda i: (i, 0)),
                # grid-invariant operands: fetched once, stay VMEM resident
                pl.BlockSpec((Hi_pad, Ho_pad), lambda i: (0, 0)),
                pl.BlockSpec((1, Ho_pad), lambda i: (0, 0)),
                pl.BlockSpec((1, Ho_pad), lambda i: (0, 0)),
                pl.BlockSpec((1, Ho_pad), lambda i: (0, 0)),
            ],
            out_specs=pl.BlockSpec((TM, Ho_pad), lambda i: (i, 0)),
        ),
        compiler_params=pltpu.CompilerParams(
            dimension_semantics=("parallel",),
            vmem_limit_bytes=vmem_limit_bytes),
    )(x_p, w_p, b_p, g_p, be_p)

    return out if Ho_pad == H_out else out[:, :H_out]


# ---------------------------------------------------------------------------
# Kernel 2: row x output-column tiled matmul + bias  (decoder / seq_relationship)
# ---------------------------------------------------------------------------
def matmul_bias_kernel(x_ref, w_ref, b_ref, o_ref):
    acc = jnp.dot(x_ref[...].astype(jnp.bfloat16), w_ref[...],
                  preferred_element_type=jnp.float32)
    o_ref[...] = (acc + b_ref[...]).astype(o_ref.dtype)


def linear_bias(x2d, w, b, *, tm: int = 512, tn: int = 512, out_dtype=None,
                vmem_limit_bytes: int = 48 << 20):
    """x2d @ w + b.  x2d: [N, H], w: [H, V], b: [V] -> [N, V]."""
    N, H = x2d.shape
    assert w.shape[0] == H
    V = w.shape[1]
    out_dtype = x2d.dtype if out_dtype is None else out_dtype

    H_pad = _round_up(H, 128)
    V_pad = _round_up(V, 128)

    x_p = x2d if H_pad == H else jnp.pad(x2d, ((0, 0), (0, H_pad - H)))
    w_p = w.astype(jnp.bfloat16)
    if (H_pad, V_pad) != w.shape:
        w_p = jnp.pad(w_p, ((0, H_pad - H), (0, V_pad - V)))
    b_p = _pad_vec(b, V_pad)

    TM = max(8, min(tm, _round_up(pl.cdiv(N, 2), 8)))
    TN = min(tn, V_pad)
    grid = (pl.cdiv(N, TM), pl.cdiv(V_pad, TN))

    out = pl.pallas_call(
        matmul_bias_kernel,
        out_shape=jax.ShapeDtypeStruct((N, V_pad), out_dtype),
        grid_spec=pltpu.PrefetchScalarGridSpec(
            num_scalar_prefetch=0,
            grid=grid,
            in_specs=[
                pl.BlockSpec((TM, H_pad), lambda i, j: (i, 0)),
                pl.BlockSpec((H_pad, TN), lambda i, j: (0, j)),
                pl.BlockSpec((1, TN), lambda i, j: (0, j)),
            ],
            out_specs=pl.BlockSpec((TM, TN), lambda i, j: (i, j)),
        ),
        compiler_params=pltpu.CompilerParams(
            dimension_semantics=("parallel", "parallel"),
            vmem_limit_bytes=vmem_limit_bytes),
    )(x_p, w_p, b_p)

    return out if V_pad == V else out[:, :V]


# ---------------------------------------------------------------------------
# Module-level wrappers (eval-mode forward of the cls heads)
# ---------------------------------------------------------------------------
def masked_word_predictions(x, p, *, out_dtype=None):
    """MaskedWordPredictions.forward: x [B,S,H] -> scores [B,S,V]."""
    B, S, H = x.shape
    x2d = x.reshape(B * S, H)
    h = dense_layernorm(x2d, p["w_t"], p["b_t"], p["gamma"], p["beta"],
                        out_dtype=out_dtype)
    scores = linear_bias(h, p["w_dec"], p["b_dec"], out_dtype=out_dtype)
    return scores.reshape(B, S, p["w_dec"].shape[1])


def bert_pretraining_heads(sequence_output, pooled_output, params):
    """BertPreTrainingHeads.forward (eval mode)."""
    pred = masked_word_predictions(sequence_output, params["predictions"])
    pred_ss = masked_word_predictions(sequence_output, params["predictions_ss"])
    seq_rel = linear_bias(pooled_output, params["seq_w"], params["seq_b"])
    return pred, pred_ss, seq_rel


# ---------------------------------------------------------------------------
# Pure-JAX references (mirror kernel precision: bf16 MXU operands, f32 epilogue)
# ---------------------------------------------------------------------------
def masked_word_predictions_ref(x, p, eps=1e-12):
    lead = x.shape[:-1]
    x2 = x.reshape(-1, x.shape[-1])
    h = jnp.dot(x2.astype(jnp.bfloat16), p["w_t"].astype(jnp.bfloat16),
                preferred_element_type=jnp.float32) + p["b_t"].astype(jnp.float32)
    u = jnp.mean(h, axis=-1, keepdims=True)
    s = jnp.mean((h - u) ** 2, axis=-1, keepdims=True)
    h = (p["gamma"] * (h - u) / jnp.sqrt(s + eps) + p["beta"]).astype(x.dtype)
    sc = jnp.dot(h.astype(jnp.bfloat16), p["w_dec"].astype(jnp.bfloat16),
                 preferred_element_type=jnp.float32) + p["b_dec"].astype(jnp.float32)
    return sc.astype(x.dtype).reshape(lead + (p["w_dec"].shape[1],))


def linear_bias_ref(x2d, w, b):
    out = jnp.dot(x2d.astype(jnp.bfloat16), w.astype(jnp.bfloat16),
                  preferred_element_type=jnp.float32) + b.astype(jnp.float32)
    return out.astype(x2d.dtype)


if __name__ == "__main__":
    # small config: batch=2, seq=8, hidden_size=32, vocab=32, ss_size=16
    B, S, H = 2, 8, 32
    VOCAB, SS, NREL = 32, 16, 2

    key = jax.random.PRNGKey(0)
    ks = jax.random.split(key, 6)

    sequence_output = jax.random.normal(ks[0], (B, S, H), dtype=jnp.float32)
    pooled_output = jax.random.normal(ks[1], (B, H), dtype=jnp.float32)

    def head_params(k, vocab):
        k1, k2, k3, k4 = jax.random.split(k, 4)
        return dict(
            # nn.Linear(H, H).weight is [H, H]; we store the transpose for x @ w
            w_t=jax.random.normal(k1, (H, H), dtype=jnp.float32) * 0.05,
            b_t=jax.random.normal(k2, (H,), dtype=jnp.float32) * 0.02,
            gamma=jnp.ones((H,), dtype=jnp.float32),
            beta=jnp.zeros((H,), dtype=jnp.float32),
            # decoder: nn.Linear(H, vocab, bias=False).weight.T, plus free bias
            w_dec=jax.random.normal(k3, (H, vocab), dtype=jnp.float32) * 0.05,
            b_dec=jax.random.normal(k4, (vocab,), dtype=jnp.float32) * 0.02,
        )

    params = dict(
        predictions=head_params(ks[2], VOCAB),
        predictions_ss=head_params(ks[3], SS),
        seq_w=jax.random.normal(ks[4], (H, NREL), dtype=jnp.float32) * 0.05,
        seq_b=jnp.zeros((NREL,), dtype=jnp.float32),
    )

    pred, pred_ss, seq_rel = bert_pretraining_heads(sequence_output, pooled_output, params)
    pred, pred_ss, seq_rel = jax.block_until_ready((pred, pred_ss, seq_rel))

    pred_ref = masked_word_predictions_ref(sequence_output, params["predictions"])
    pred_ss_ref = masked_word_predictions_ref(sequence_output, params["predictions_ss"])
    seq_rel_ref = linear_bias_ref(pooled_output, params["seq_w"], params["seq_b"])

    assert pred.shape == (B, S, VOCAB)
    assert pred_ss.shape == (B, S, SS)
    assert seq_rel.shape == (B, NREL)
    for got, ref in ((pred, pred_ref), (pred_ss, pred_ss_ref), (seq_rel, seq_rel_ref)):
        err = jnp.max(jnp.abs(got.astype(jnp.float32) - ref.astype(jnp.float32)))
        assert err < 2e-3, f"max abs err {err}"

    print("KERNEL_OK")
</pallas_src>

<mosaic_0001>
module attributes {stable_mosaic.version = 11 : i64} {
  func.func @dense_layernorm_kernel(%arg0: i32, %arg1: memref<8x128xf32, #tpu.memory_space<vmem>>, %arg2: memref<128x128xbf16, #tpu.memory_space<vmem>>, %arg3: memref<1x128xf32, #tpu.memory_space<vmem>>, %arg4: memref<1x128xf32, #tpu.memory_space<vmem>>, %arg5: memref<1x128xf32, #tpu.memory_space<vmem>>, %arg6: memref<8x128xf32, #tpu.memory_space<vmem>>) attributes {dimension_semantics = [#tpu.dimension_semantics<parallel>], iteration_bounds = array<i64: 2>, scalar_prefetch = 0 : i64, scratch_operands = 0 : i64, tpu.core_type = #tpu.core_type<tc>, window_params = [{transform_indices = @transform_0, window_bounds = array<i64: 8, 128>}, {pipeline_mode = #tpu.pipeline_mode<synchronous>, transform_indices = @transform_1, window_bounds = array<i64: 128, 128>}, {pipeline_mode = #tpu.pipeline_mode<synchronous>, transform_indices = @transform_2, window_bounds = array<i64: 1, 128>}, {pipeline_mode = #tpu.pipeline_mode<synchronous>, transform_indices = @transform_3, window_bounds = array<i64: 1, 128>}, {pipeline_mode = #tpu.pipeline_mode<synchronous>, transform_indices = @transform_4, window_bounds = array<i64: 1, 128>}, {transform_indices = @transform_5, window_bounds = array<i64: 8, 128>}]} {
    %c0 = arith.constant 0 : index
    %c0_0 = arith.constant 0 : index
    %0 = vector.load %arg1[%c0, %c0_0] : memref<8x128xf32, #tpu.memory_space<vmem>>, vector<8x128xf32>
    %1 = arith.truncf %0 : vector<8x128xf32> to vector<8x128xbf16>
    %c0_1 = arith.constant 0 : index
    %c0_2 = arith.constant 0 : index
    %2 = vector.load %arg2[%c0_1, %c0_2] : memref<128x128xbf16, #tpu.memory_space<vmem>>, vector<128x128xbf16>
    %cst = arith.constant dense<0.000000e+00> : vector<8x128xf32>
    %3 = tpu.matmul %1, %2, %cst {dimension_numbers = #tpu.dot_dimension_numbers<[1], [0], [0], [1], [0, 0, 1, 1], [], []>} : vector<8x128xbf16>, vector<128x128xbf16>, vector<8x128xf32> -> vector<8x128xf32>
    %c0_3 = arith.constant 0 : index
    %c0_4 = arith.constant 0 : index
    %4 = vector.load %arg3[%c0_3, %c0_4] : memref<1x128xf32, #tpu.memory_space<vmem>>, vector<1x128xf32>
    %5 = vector.broadcast %4 : vector<1x128xf32> to vector<8x128xf32>
    %6 = arith.addf %3, %5 : vector<8x128xf32>
    %cst_5 = arith.constant dense<0.000000e+00> : vector<8xf32>
    %7 = vector.multi_reduction <add>, %6, %cst_5 [1] : vector<8x128xf32> to vector<8xf32>
    %8 = vector.shape_cast %7 : vector<8xf32> to vector<8x1xf32>
    %cst_6 = arith.constant 3.125000e-02 : f32
    %9 = vector.broadcast %cst_6 : f32 to vector<8x1xf32>
    %10 = arith.mulf %8, %9 : vector<8x1xf32>
    %11 = arith.mulf %6, %6 : vector<8x128xf32>
    %cst_7 = arith.constant dense<0.000000e+00> : vector<8xf32>
    %12 = vector.multi_reduction <add>, %11, %cst_7 [1] : vector<8x128xf32> to vector<8xf32>
    %13 = vector.shape_cast %12 : vector<8xf32> to vector<8x1xf32>
    %cst_8 = arith.constant 3.125000e-02 : f32
    %14 = vector.broadcast %cst_8 : f32 to vector<8x1xf32>
    %15 = arith.mulf %13, %14 : vector<8x1xf32>
    %16 = arith.mulf %10, %10 : vector<8x1xf32>
    %17 = arith.subf %15, %16 : vector<8x1xf32>
    %cst_9 = arith.constant 0.000000e+00 : f32
    %18 = vector.broadcast %cst_9 : f32 to vector<8x1xf32>
    %19 = arith.maximumf %17, %18 : vector<8x1xf32>
    %20 = vector.broadcast %10 : vector<8x1xf32> to vector<8x128xf32>
    %21 = arith.subf %6, %20 : vector<8x128xf32>
    %cst_10 = arith.constant 9.99999996E-13 : f32
    %22 = vector.broadcast %cst_10 : f32 to vector<8x1xf32>
    %23 = arith.addf %19, %22 : vector<8x1xf32>
    %24 = math.rsqrt %23 : vector<8x1xf32>
    %25 = vector.broadcast %24 : vector<8x1xf32> to vector<8x128xf32>
    %26 = arith.mulf %21, %25 : vector<8x128xf32>
    %c0_11 = arith.constant 0 : index
    %c0_12 = arith.constant 0 : index
    %27 = vector.load %arg4[%c0_11, %c0_12] : memref<1x128xf32, #tpu.memory_space<vmem>>, vector<1x128xf32>
    %28 = vector.broadcast %27 : vector<1x128xf32> to vector<8x128xf32>
    %29 = arith.mulf %28, %26 : vector<8x128xf32>
    %c0_13 = arith.constant 0 : index
    %c0_14 = arith.constant 0 : index
    %30 = vector.load %arg5[%c0_13, %c0_14] : memref<1x128xf32, #tpu.memory_space<vmem>>, vector<1x128xf32>
    %31 = vector.broadcast %30 : vector<1x128xf32> to vector<8x128xf32>
    %32 = arith.addf %29, %31 : vector<8x128xf32>
    %c0_15 = arith.constant 0 : index
    %c0_16 = arith.constant 0 : index
    %33 = vector.load %arg6[%c0_15, %c0_16] : memref<8x128xf32, #tpu.memory_space<vmem>>, vector<8x128xf32>
    tpu.vector_store %arg6[%c0_15, %c0_16], %32 {strides = array<i32>} : memref<8x128xf32, #tpu.memory_space<vmem>>, vector<8x128xf32>,
    return
  }
  func.func @transform_0(%arg0: i32) -> (i32, i32) {
    %c0_i32 = arith.constant 0 : i32
    %c0_i32_0 = arith.constant 0 : i32
    return %arg0, %c0_i32 : i32, i32
  }
  func.func @transform_1(%arg0: i32) -> (i32, i32) {
    %c0_i32 = arith.constant 0 : i32
    %c0_i32_0 = arith.constant 0 : i32
    %c0_i32_1 = arith.constant 0 : i32
    return %c0_i32, %c0_i32_0 : i32, i32
  }
  func.func @transform_2(%arg0: i32) -> (i32, i32) {
    %c0_i32 = arith.constant 0 : i32
    %c0_i32_0 = arith.constant 0 : i32
    %c0_i32_1 = arith.constant 0 : i32
    return %c0_i32, %c0_i32_0 : i32, i32
  }
  func.func @transform_3(%arg0: i32) -> (i32, i32) {
    %c0_i32 = arith.constant 0 : i32
    %c0_i32_0 = arith.constant 0 : i32
    %c0_i32_1 = arith.constant 0 : i32
    return %c0_i32, %c0_i32_0 : i32, i32
  }
  func.func @transform_4(%arg0: i32) -> (i32, i32) {
    %c0_i32 = arith.constant 0 : i32
    %c0_i32_0 = arith.constant 0 : i32
    %c0_i32_1 = arith.constant 0 : i32
    return %c0_i32, %c0_i32_0 : i32, i32
  }
  func.func @transform_5(%arg0: i32) -> (i32, i32) {
    %c0_i32 = arith.constant 0 : i32
    %c0_i32_0 = arith.constant 0 : i32
    return %arg0, %c0_i32 : i32, i32
  }
}

</mosaic_0001>

<llo_original>
// kernel: tpu_custom_call.1
$region0: #{tpu_custom_call.1}
  #allocation0 [shape = 'u32[]', space=smem, size = 0x4, offset = 0x4, fixed_abs, tag = 'smem constant byte address 0x4 - core index']
  #allocation1 [shape = 'u32[144,128]{1,0:T(1,128)}', space=vmem, size = 0x12000, scoped, tag = 'internal scratch']
  %s0 = inlined_call_operand.hbm [shape: f32[16,128], index: 0, kind: input, shape index: {}]
  %s1 = inlined_call_operand.hbm [shape: bf16[128,128], index: 1, kind: input, shape index: {}]
  %s2 = inlined_call_operand.vmem [shape: f32[1,128], index: 2, kind: input, shape index: {}]
  %s3 = inlined_call_operand.vmem [shape: f32[1,128], index: 3, kind: input, shape index: {}]
  %s4 = inlined_call_operand.vmem [shape: f32[1,128], index: 4, kind: input, shape index: {}]
  %s5 = inlined_call_operand.hbm [shape: f32[16,128], index: 5, kind: output, shape index: {}]
  %s6 = sld [smem:[#allocation0]]
  $region61: #{tpu_custom_call.1} parent=0
    _
  %s8 = ssub.s32 1, %s6
  %s9 = scalar_select 0, %s8, %s6
  $region1: #{tpu_custom_call.1} parent=0
    #allocation2 [shape = 'u8[8192]{0}', space=vmem, size = 0x2000, scoped, tag = 'input window, operand 0']
    #allocation3 [shape = 's32[2]{0}', space=sflag, size = 0x8, scoped, tag = 'scoped memory for tpu_custom_call.1']
    #allocation4 [shape = 's32[2]{0}', space=sflag, size = 0x8, scoped, tag = 'scoped memory for tpu_custom_call.1']
    #allocation5 [shape = 'u8[32768]{0}', space=vmem, size = 0x8000, scoped, tag = 'input window, operand 1, single buffered']
    #allocation6 [shape = 's32[1]{0}', space=sflag, size = 0x4, scoped, tag = 'scoped memory for tpu_custom_call.1']
    #allocation7 [shape = 'u8[8192]{0}', space=vmem, size = 0x2000, scoped, tag = 'output window, operand 0']
    %10 = vsyncpa [#allocation3], 0
    %s11 = scalar_lea.sflag [#allocation3], 1
    %12 = vsyncpa %s11, 0
    %13 = vsyncpa [#allocation6], 0
    %14 = vsyncpa [#allocation4], 0
    %s15 = scalar_lea.sflag [#allocation4], 1
    %16 = vsyncpa %s15, 0
    loop: start=0, step=1, limit=4
    $region2: #{tpu_custom_call.1} parent=1 // loop_pre_header
      _
    $region3: #{tpu_custom_call.1} parent=1 // loop_header
      %s18 = sphi 0, %s22
      %p19 = scmp.ge.s32.totalorder %s18, 4
      %s28 = sphi 0, %s30
      %s31 = sphi 0, %s28
      %s32 = sphi 0, %s31
      %s48 = sphi 0, %s32
      %s52 = sphi 0, %s52
      %s54 = sphi 0, %s52
      %s55 = sphi 0, %s54
      %s69 = sphi 0, %s55
      %s73 = sphi 0, %s73
      %s75 = sphi 0, %s73
      %s76 = sphi 0, %s75
      %s90 = sphi 0, %s76
      %s94 = sphi 0, %s94
      %s96 = sphi 0, %s94
      %s97 = sphi 0, %s96
      %s111 = sphi 0, %s97
      %s115 = sphi 0, %s115
      %s117 = sphi 0, %s115
      %s118 = sphi 0, %s117
      %s132 = sphi 0, %s118
      %s138 = sphi 0, %s140
      %s141 = sphi 0, %s138
      %s142 = sphi 0, %s141
      %s158 = sphi 0, %s142
    $region4: #{tpu_custom_call.1} parent=1 // loop_header_branch
      %21 = sbr.rel (%p19) target = $region8
    $region5: #{tpu_custom_call.1} parent=1 // loop_body
      %s23 = ssub.s32 %s18, 1
      %s24 = ssub.s32 %s18, 2
      %s25 = sadd.s32 %s18, 1
      %s26 = ssub.s32 %s18, %s25
      %p27 = scmp.eq.s32.totalorder %s26, 0
      %s29 = sadd.s32 %s28, 1
      %s30 = scalar_select %p27, %s28, %s29
      %p33 = pneg %p27
      %p34 = scmp.eq.s32.totalorder %s18, 1
      %p35 = por %p33, %p34
      %p36 = scmp.ne.s32.totalorder %s28, %s31
      %p37 = scmp.eq.s32.totalorder %s18, 0
      %p38 = por %p36, %p37
      %p39 = scmp.ne.s32.totalorder %s28, %s31
      %p40 = scmp.eq.s32.totalorder %s23, 1
      %p41 = por %p39, %p40
      %p42 = scmp.ne.s32.totalorder %s31, %s32
      %p43 = scmp.eq.s32.totalorder %s23, 0
      %p44 = por %p42, %p43
      %p45 = scmp.ne.s32.totalorder %s31, %s32
      %p46 = scmp.eq.s32.totalorder %s24, 1
      %p47 = por %p45, %p46
      %p49 = scmp.ne.s32.totalorder %s32, %s48
      %p50 = scmp.eq.s32.totalorder %s24, 0
      %p51 = por %p49, %p50
      %s53 = sadd.s32 %s52, 1
      %p56 = scmp.eq.s32.totalorder %s18, 1
      %p57 = scmp.ne.s32.totalorder %s52, %s54
      %p58 = scmp.eq.s32.totalorder %s18, 0
      %p59 = por %p57, %p58
      %p60 = scmp.ne.s32.totalorder %s52, %s54
      %p61 = scmp.eq.s32.totalorder %s23, 1
      %p62 = por %p60, %p61
      %p63 = scmp.ne.s32.totalorder %s54, %s55
      %p64 = scmp.eq.s32.totalorder %s23, 0
      %p65 = por %p63, %p64
      %p66 = scmp.ne.s32.totalorder %s54, %s55
      %p67 = scmp.eq.s32.totalorder %s24, 1
      %p68 = por %p66, %p67
      %p70 = scmp.ne.s32.totalorder %s55, %s69
      %p71 = scmp.eq.s32.totalorder %s24, 0
      %p72 = por %p70, %p71
      %s74 = sadd.s32 %s73, 1
      %p77 = scmp.eq.s32.totalorder %s18, 1
      %p78 = scmp.ne.s32.totalorder %s73, %s75
      %p79 = scmp.eq.s32.totalorder %s18, 0
      %p80 = por %p78, %p79
      %p81 = scmp.ne.s32.totalorder %s73, %s75
      %p82 = scmp.eq.s32.totalorder %s23, 1
      %p83 = por %p81, %p82
      %p84 = scmp.ne.s32.totalorder %s75, %s76
      %p85 = scmp.eq.s32.totalorder %s23, 0
      %p86 = por %p84, %p85
      %p87 = scmp.ne.s32.totalorder %s75, %s76
      %p88 = scmp.eq.s32.totalorder %s24, 1
      %p89 = por %p87, %p88
      %p91 = scmp.ne.s32.totalorder %s76, %s90
      %p92 = scmp.eq.s32.totalorder %s24, 0
      %p93 = por %p91, %p92
      %s95 = sadd.s32 %s94, 1
      %p98 = scmp.eq.s32.totalorder %s18, 1
      %p99 = scmp.ne.s32.totalorder %s94, %s96
      %p100 = scmp.eq.s32.totalorder %s18, 0
      %p101 = por %p99, %p100
      %p102 = scmp.ne.s32.totalorder %s94, %s96
      %p103 = scmp.eq.s32.totalorder %s23, 1
      %p104 = por %p102, %p103
      %p105 = scmp.ne.s32.totalorder %s96, %s97
      %p106 = scmp.eq.s32.totalorder %s23, 0
      %p107 = por %p105, %p106
      %p108 = scmp.ne.s32.totalorder %s96, %s97
      %p109 = scmp.eq.s32.totalorder %s24, 1
      %p110 = por %p108, %p109
      %p112 = scmp.ne.s32.totalorder %s97, %s111
      %p113 = scmp.eq.s32.totalorder %s24, 0
      %p114 = por %p112, %p113
      %s116 = sadd.s32 %s115, 1
      %p119 = scmp.eq.s32.totalorder %s18, 1
      %p120 = scmp.ne.s32.totalorder %s115, %s117
      %p121 = scmp.eq.s32.totalorder %s18, 0
      %p122 = por %p120, %p121
      %p123 = scmp.ne.s32.totalorder %s115, %s117
      %p124 = scmp.eq.s32.totalorder %s23, 1
      %p125 = por %p123, %p124
      %p126 = scmp.ne.s32.totalorder %s117, %s118
      %p127 = scmp.eq.s32.totalorder %s23, 0
      %p128 = por %p126, %p127
      %p129 = scmp.ne.s32.totalorder %s117, %s118
      %p130 = scmp.eq.s32.totalorder %s24, 1
      %p131 = por %p129, %p130
      %p133 = scmp.ne.s32.totalorder %s118, %s132
      %p134 = scmp.eq.s32.totalorder %s24, 0
      %p135 = por %p133, %p134
      %s136 = ssub.s32 %s18, %s25
      %p137 = scmp.eq.s32.totalorder %s136, 0
      %s139 = sadd.s32 %s138, 1
      %s140 = scalar_select %p137, %s138, %s139
      %p143 = pneg %p137
      %p144 = scmp.eq.s32.totalorder %s18, 1
      %p145 = por %p143, %p144
      %p146 = scmp.ne.s32.totalorder %s138, %s141
      %p147 = scmp.eq.s32.totalorder %s18, 0
      %p148 = por %p146, %p147
      %p149 = scmp.ne.s32.totalorder %s138, %s141
      %p150 = scmp.eq.s32.totalorder %s23, 1
      %p151 = por %p149, %p150
      %p152 = scmp.ne.s32.totalorder %s141, %s142
      %p153 = scmp.eq.s32.totalorder %s23, 0
      %p154 = por %p152, %p153
      %p155 = scmp.ne.s32.totalorder %s141, %s142
      %p156 = scmp.eq.s32.totalorder %s24, 1
      %p157 = por %p155, %p156
      %p159 = scmp.ne.s32.totalorder %s142, %s158
      %p160 = scmp.eq.s32.totalorder %s24, 0
      %p161 = por %p159, %p160
      %p162 = scmp.le.s32.totalorder 1, %s18
      %p163 = scmp.lt.s32.totalorder %s18, 3
      %p164 = pnand %p162, %p163
      %p165 = pneg %p164
      // Predicated region
      $region9: #{tpu_custom_call.1} parent=5 // pred_check
        _
      $region10: #{tpu_custom_call.1} parent=5 // pred_check_branch
        %167 = sbr.rel (%p164) target = $region12
      $region11: #{tpu_custom_call.1} parent=5 // pred_region
        %s168 = ssub.s32 %s18, 1
        // Predicated region
        $region13: #{tpu_custom_call.1} parent=11 // pred_check
          %p169 = pneg %p65
        $region14: #{tpu_custom_call.1} parent=11 // pred_check_branch
          %171 = sbr.rel (%p169) target = $region16
        $region15: #{tpu_custom_call.1} parent=11 // pred_region
          %s173 = ssub.s32 1024, 1024
          %174 = vsyncadd [#allocation6], %s173
          %s175 = sshll.u32 [#allocation5], 4
          %s176 = int_to_ptr.vmem [resolvable:$true] %s175
          %181 = dma.hbm_to_vmem [thread:$0]  %s1, 1024, %s176, [#allocation6], 64, 64, 4
        $region16: #{tpu_custom_call.1} parent=11 // pred_fallthru
          _
        // Predicated region
        $region17: #{tpu_custom_call.1} parent=11 // pred_check
          %p182 = pneg %p86
        $region18: #{tpu_custom_call.1} parent=11 // pred_check_branch
          %184 = sbr.rel (%p182) target = $region20
        $region19: #{tpu_custom_call.1} parent=11 // pred_region
          _
        $region20: #{tpu_custom_call.1} parent=11 // pred_fallthru
          _
        // Predicated region
        $region21: #{tpu_custom_call.1} parent=11 // pred_check
          %p185 = pneg %p107
        $region22: #{tpu_custom_call.1} parent=11 // pred_check_branch
          %187 = sbr.rel (%p185) target = $region24
        $region23: #{tpu_custom_call.1} parent=11 // pred_region
          _
        $region24: #{tpu_custom_call.1} parent=11 // pred_fallthru
          _
        // Predicated region
        $region25: #{tpu_custom_call.1} parent=11 // pred_check
          %p188 = pneg %p128
        $region26: #{tpu_custom_call.1} parent=11 // pred_check_branch
          %190 = sbr.rel (%p188) target = $region28
        $region27: #{tpu_custom_call.1} parent=11 // pred_region
          _
        $region28: #{tpu_custom_call.1} parent=11 // pred_fallthru
          _
      $region12: #{tpu_custom_call.1} parent=5 // pred_fallthru
        _
      %p191 = scmp.lt.s32.totalorder %s18, 2
      // Predicated region
      $region29: #{tpu_custom_call.1} parent=5 // pred_check
        %p192 = pneg %p191
      $region30: #{tpu_custom_call.1} parent=5 // pred_check_branch
        %194 = sbr.rel (%p192) target = $region32
      $region31: #{tpu_custom_call.1} parent=5 // pred_region
        // Predicated region
        $region33: #{tpu_custom_call.1} parent=31 // pred_check
          %p195 = pneg %p38
        $region34: #{tpu_custom_call.1} parent=31 // pred_check_branch
          %197 = sbr.rel (%p195) target = $region36
        $region35: #{tpu_custom_call.1} parent=31 // pred_region
          %s198 = sand.u32 %s28, 1
          %s199 = scalar_lea.sflag [#allocation3], %s198
          %s200 = sand.u32 %s28, 1
          %s201 = smul.addr %s200, 8
          %s202 = scalar_lea.vmem [#allocation2], %s201
          %s204 = ssub.s32 128, 128
          %205 = vsyncadd %s199, %s204
          %s206 = smul.addr %s18, 128
          %s207 = scalar_lea.hbm %s0, %s206
          %s209 = sshll.u32 %s202, 4
          %s210 = int_to_ptr.vmem [resolvable:$true] %s209
          %212 = dma.hbm_to_vmem [thread:$0]  %s207, 128, %s210, %s199
        $region36: #{tpu_custom_call.1} parent=31 // pred_fallthru
          _
      $region32: #{tpu_custom_call.1} parent=5 // pred_fallthru
        _
      %p213 = scmp.le.s32.totalorder 1, %s18
      %p214 = scmp.lt.s32.totalorder %s18, 3
      %p215 = pnand %p213, %p214
      %p216 = pneg %p215
      // Predicated region
      $region37: #{tpu_custom_call.1} parent=5 // pred_check
        _
      $region38: #{tpu_custom_call.1} parent=5 // pred_check_branch
        %218 = sbr.rel (%p215) target = $region40
      $region39: #{tpu_custom_call.1} parent=5 // pred_region
        %s219 = ssub.s32 %s18, 1
        %s220 = sand.u32 %s31, 1
        %s221 = scalar_lea.sflag [#allocation3], %s220
        %s222 = sand.u32 %s31, 1
        %s223 = smul.addr %s222, 8
        %s224 = scalar_lea.vmem [#allocation2], %s223
        // Predicated region
        $region41: #{tpu_custom_call.1} parent=39 // pred_check
          %p225 = pneg %p44
        $region42: #{tpu_custom_call.1} parent=39 // pred_check_branch
          %227 = sbr.rel (%p225) target = $region44
        $region43: #{tpu_custom_call.1} parent=39 // pred_region
          %228 = dma.done %s221, 128
        $region44: #{tpu_custom_call.1} parent=39 // pred_fallthru
          _
        // Predicated region
        $region45: #{tpu_custom_call.1} parent=39 // pred_check
          %p229 = pneg %p65
        $region46: #{tpu_custom_call.1} parent=39 // pred_check_branch
          %231 = sbr.rel (%p229) target = $region48
        $region47: #{tpu_custom_call.1} parent=39 // pred_region
          %232 = dma.done [#allocation6], 1024
        $region48: #{tpu_custom_call.1} parent=39 // pred_fallthru
          _
        %s233 = sand.u32 %s31, 1
        %s234 = scalar_lea.sflag [#allocation3], %s233
        %s235 = sand.u32 %s31, 1
        %s236 = smul.addr %s235, 8
        %s237 = scalar_lea.vmem [#allocation2], %s236
        %p238 = pneg %p44
        %p239 = pneg %p41
        %p240 = pneg %p65
        %p241 = pneg %p62
        %p242 = pneg %p86
        %p243 = pneg %p83
        %p244 = pneg %p107
        %p245 = pneg %p104
        %p246 = pneg %p128
        %p247 = pneg %p125
        %p248 = pneg %p154
        %p249 = pneg %p151
        %s250 = sand.u32 %s141, 1
        %s251 = scalar_lea.sflag [#allocation4], %s250
        %s252 = sand.u32 %s141, 1
        %s253 = smul.addr %s252, 8
        %s254 = scalar_lea.vmem [#allocation7], %s253
        %v256 = vld [vmem:[%s224] sm:$0xff]
        %v257 = vpack.c.bf16 %v256, %v256
        %v258 = vld [vmem:[#allocation5] sm:$0xf]
        %v259 = vld [vmem:[#allocation5 + $0x4] sm:$0xf]
        %v260 = vld [vmem:[#allocation5 + $0x8] sm:$0xf]
        %v261 = vld [vmem:[#allocation5 + $0xc] sm:$0xf]
        %v262 = vld [vmem:[#allocation5 + $0x10] sm:$0xf]
        %v263 = vld [vmem:[#allocation5 + $0x14] sm:$0xf]
        %v264 = vld [vmem:[#allocation5 + $0x18] sm:$0xf]
        %v265 = vld [vmem:[#allocation5 + $0x1c] sm:$0xf]
        %v266 = vld [vmem:[#allocation5 + $0x20] sm:$0xf]
        %v267 = vld [vmem:[#allocation5 + $0x24] sm:$0xf]
        %v268 = vld [vmem:[#allocation5 + $0x28] sm:$0xf]
        %v269 = vld [vmem:[#allocation5 + $0x2c] sm:$0xf]
        %v270 = vld [vmem:[#allocation5 + $0x30] sm:$0xf]
        %v271 = vld [vmem:[#allocation5 + $0x34] sm:$0xf]
        %v272 = vld [vmem:[#allocation5 + $0x38] sm:$0xf]
        %v273 = vld [vmem:[#allocation5 + $0x3c] sm:$0xf]
        %v274 = vld [vmem:[%s2] sm:$0x1]
        %v276 = vlaneseq
        %v277 = vshrl.u32 %v276, 7
        %v278 = vsub.s32 0, %v277
        %v279 = vrot.slane %v274, %v278
        %v297 = vunpack.c.l.b16 %v258
        %v298 = vunpack.c.l.b16 %v259
        %v299 = vunpack.c.l.b16 %v260
        %v300 = vunpack.c.l.b16 %v261
        %v301 = vunpack.c.l.b16 %v262
        %v302 = vunpack.c.l.b16 %v263
        %v303 = vunpack.c.l.b16 %v264
        %v304 = vunpack.c.l.b16 %v265
        %v305 = vunpack.c.l.b16 %v266
        %v306 = vunpack.c.l.b16 %v267
        %v307 = vunpack.c.l.b16 %v268
        %v308 = vunpack.c.l.b16 %v269
        %v309 = vunpack.c.l.b16 %v270
        %v310 = vunpack.c.l.b16 %v271
        %v311 = vunpack.c.l.b16 %v272
        %v312 = vunpack.c.l.b16 %v273
        %v313 = vpack.c.b16 %v298, %v297
        %v314 = vpack.c.b16 %v300, %v299
        %v315 = vpack.c.b16 %v302, %v301
        %v316 = vpack.c.b16 %v304, %v303
        %v317 = vpack.c.b16 %v306, %v305
        %v318 = vpack.c.b16 %v308, %v307
        %v319 = vpack.c.b16 %v310, %v309
        %v320 = vpack.c.b16 %v312, %v311
        %329 = vmatprep.subr.bf16.mxu0 0
        %330 = vmatpush1.bf16.msra.mxu0 %v320
        %331 = vmatprep.subr.bf16.mxu0 0
        %332 = vmatpush1.bf16.msra.mxu0 %v319
        %333 = vmatprep.subr.bf16.mxu0 0
        %334 = vmatpush1.bf16.msra.mxu0 %v318
        %335 = vmatprep.subr.bf16.mxu0 0
        %336 = vmatpush1.bf16.msra.mxu0 %v317
        %337 = vmatprep.subr.bf16.mxu0 0
        %338 = vmatpush1.bf16.msra.mxu0 %v316
        %339 = vmatprep.subr.bf16.mxu0 0
        %340 = vmatpush1.bf16.msra.mxu0 %v315
        %341 = vmatprep.subr.bf16.mxu0 0
        %342 = vmatpush1.bf16.msra.mxu0 %v314
        %343 = vmatprep.subr.bf16.mxu0 0
        %344 = vmatpush1.bf16.msra.mxu0 %v313
        %345 = vmatprep.subr.bf16.mxu0 0
        %346 = vmatpush2.bf16.msra.mxu0 0
        %347 = vmatprep.subr.bf16.mxu0 0
        %348 = vmatpush2.bf16.msra.mxu0 0
        %349 = vmatprep.subr.bf16.mxu0 0
        %350 = vmatpush2.bf16.msra.mxu0 0
        %351 = vmatprep.subr.bf16.mxu0 0
        %352 = vmatpush2.bf16.msra.mxu0 0
        %353 = vmatprep.subr.bf16.mxu0 0
        %354 = vmatpush2.bf16.msra.mxu0 0
        %355 = vmatprep.subr.bf16.mxu0 0
        %356 = vmatpush2.bf16.msra.mxu0 0
        %357 = vmatprep.subr.bf16.mxu0 0
        %358 = vmatpush2.bf16.msra.mxu0 0
        %359 = vmatprep.subr.bf16.mxu0 0
        %360 = vmatpush2.bf16.msra.mxu0 0
        %361 = vmatprep.mubr.bf16.mxu0 0
        %362 = vmatmul.mubr.bf16.gmra.mxu0 %v257
        %v363 = vpop.f32.mrf.mxu0
        %v364 = vadd.f32 %v279, %v363
        %v365 = vpop.f32.mrf.mxu0
        %v366 = vpop.f32.mrf.mxu0
        %v367 = vpop.f32.mrf.mxu0
        %368 = vdwg.mxu0
        %369 = vadd.xlane.f32.xlu0 %v364
        %v370 = vpop.xlane.xlu0 %369
        %v371 = vmul.f32 %v370, 0.03125
        %v372 = vmul.f32 %v364, %v364
        %373 = vadd.xlane.f32.xlu0 %v372
        %v374 = vpop.xlane.xlu0 %373
        %v375 = vmul.f32 %v374, 0.03125
        %v376 = vmul.f32 %v371, %v371
        %v377 = vsub.f32 %v375, %v376
        %v378 = vmax.f32 %v377, 0.0
        %v379 = vsub.f32 %v364, %v371
        %v380 = vadd.f32 %v378, 1e-12
        %v381 = vrsqrt.pop %v380
        %v382 = vmul.f32 %v379, %v381
        %v383 = vld [vmem:[%s3] sm:$0x1]
        %v385 = vlaneseq
        %v386 = vshrl.u32 %v385, 7
        %v387 = vsub.s32 0, %v386
        %v388 = vrot.slane %v383, %v387
        %v390 = vmul.f32 %v388, %v382
        %v391 = vld [vmem:[%s4] sm:$0x1]
        %v393 = vlaneseq
        %v394 = vshrl.u32 %v393, 7
        %v395 = vsub.s32 0, %v394
        %v396 = vrot.slane %v391, %v395
        %v398 = vadd.f32 %v390, %v396
        %399 = vst [vmem:[%s254] sm:$0xff] %v398
        %s400 = sand.u32 %s141, 1
        %s401 = scalar_lea.sflag [#allocation4], %s400
        %s402 = sand.u32 %s141, 1
        %s403 = smul.addr %s402, 8
        %s404 = scalar_lea.vmem [#allocation7], %s403
        // Predicated region
        $region49: #{tpu_custom_call.1} parent=39 // pred_check
          %p405 = pneg %p151
        $region50: #{tpu_custom_call.1} parent=39 // pred_check_branch
          %407 = sbr.rel (%p405) target = $region52
        $region51: #{tpu_custom_call.1} parent=39 // pred_region
          %s409 = ssub.s32 128, 128
          %410 = vsyncadd %s401, %s409
          %s411 = smul.addr %s23, 128
          %s412 = scalar_lea.hbm %s5, %s411
          %s414 = sshll.u32 %s404, 4
          %s415 = int_to_ptr.vmem [resolvable:$true] %s414
          %417 = dma.vmem_to_hbm [thread:$0]  %s415, 128, %s412, %s401
        $region52: #{tpu_custom_call.1} parent=39 // pred_fallthru
          _
      $region40: #{tpu_custom_call.1} parent=5 // pred_fallthru
        _
      %p418 = scmp.le.s32.totalorder 2, %s18
      // Predicated region
      $region53: #{tpu_custom_call.1} parent=5 // pred_check
        %p419 = pneg %p418
      $region54: #{tpu_custom_call.1} parent=5 // pred_check_branch
        %421 = sbr.rel (%p419) target = $region56
      $region55: #{tpu_custom_call.1} parent=5 // pred_region
        %s422 = ssub.s32 %s18, 2
        // Predicated region
        $region57: #{tpu_custom_call.1} parent=55 // pred_check
          %p423 = pneg %p157
        $region58: #{tpu_custom_call.1} parent=55 // pred_check_branch
          %425 = sbr.rel (%p423) target = $region60
        $region59: #{tpu_custom_call.1} parent=55 // pred_region
          %s426 = sand.u32 %s142, 1
          %s427 = scalar_lea.sflag [#allocation4], %s426
          %s428 = sand.u32 %s142, 1
          %s429 = smul.addr %s428, 8
          %s430 = scalar_lea.vmem [#allocation7], %s429
          %431 = dma.done %s427, 128
        $region60: #{tpu_custom_call.1} parent=55 // pred_fallthru
          _
      $region56: #{tpu_custom_call.1} parent=5 // pred_fallthru
        _
    $region6: #{tpu_custom_call.1} parent=1 // loop_footer
      %s22 = sadd.s32 1, %s18
    $region7: #{tpu_custom_call.1} parent=1 // loop_footer_branch
      %17 = sbr.rel target = $region3
    $region8: #{tpu_custom_call.1} parent=1 // loop_exit
      _
    %432 = vsyncpa [#allocation3], 1
    %s433 = scalar_lea.sflag [#allocation3], 1
    %434 = vsyncpa %s433, 1
    %435 = vsyncpa [#allocation6], 1
    %436 = vsyncpa [#allocation4], 1
    %s437 = scalar_lea.sflag [#allocation4], 1
    %438 = vsyncpa %s437, 1

</llo_original>
